<compile_context>
chip_gen: v5e
topology: v5e:2x2
jax: 0.10.0
libtpu: 0.0.40
codegen_flags: <defaults>
</compile_context>

<pallas_src>
import math

import jax
import jax.numpy as jnp
from jax.experimental import pallas as pl
from jax.experimental.pallas import tpu as pltpu

# ---- module configuration (small, consistent with the module __init__) -----
B, T, C = 2, 8, 32          # batch, n_positions (seq), n_embd
N_HEAD = 4
DH = C // N_HEAD            # head dim
N_STATE = 4 * C             # MLP hidden (4 * n_embd)
BT = B * T                  # flattened tokens
HBT = N_HEAD * BT           # head-stacked rows
SCALE = True                # Attention(..., scale=True)
LN_EPS = 1e-5               # config.layer_norm_epsilon
# config.afn == 'gelu' -> ACT_FNS['gelu'] (tanh approximation); gated_layer is
# None.  attn_dropout / resid_dropout are identity (eval mode).

assert 3 * C <= 128 and N_STATE <= 128, "scalar slab packing assumes <=128 lanes/row"


def _layer_norm(x, g, b, eps):
    # statistics stay in f32 on the VPU (v5e has no bf16 VPU/EUP)
    mu = jnp.mean(x, axis=-1, keepdims=True)
    var = jnp.mean((x - mu) ** 2, axis=-1, keepdims=True)
    return (x - mu) * jax.lax.rsqrt(var + eps) * g + b


def _gelu_new(x):
    # HF ACT_FNS["gelu"] (tanh approximation)
    return 0.5 * x * (1.0 + jnp.tanh(
        math.sqrt(2.0 / math.pi) * (x + 0.044715 * x ** 3)))


def block_kernel(x_ref, wqkv_ref, cpw_ref, fcw_ref, mpw_ref, slab_ref, mask_ref,
                 out_ref, resid_ref):
    layer = pl.program_id(0)

    # residual stream lives in VMEM scratch across the layer grid axis
    @pl.when(layer == 0)
    def _():
        resid_ref[...] = x_ref[...]

    x = resid_ref[...]                                   # (BT, C) f32 residual

    # ---- unpack the per-layer scalar slab (one DMA instead of 12) ----------
    slab = slab_ref[0]                                   # (8, 128) f32
    b_qkv = slab[0:1, 0:3 * C]                           # (1, 3C)  QKV bias (Q scaled)
    fcb = slab[1:2, 0:N_STATE]                           # (1, 4C)  c_fc bias
    cpb = slab[2:3, 0:C]                                 # (1, C)   attn c_proj bias
    mpb = slab[3:4, 0:C]                                 # (1, C)   mlp c_proj bias
    ln1g = slab[4:5, 0:C]
    ln1b = slab[5:6, 0:C]
    ln2g = slab[6:7, 0:C]
    ln2b = slab[7:8, 0:C]

    # ---- fused QKV projection: one MXU op (scale folded into Q wrapper-side)
    x_bf = x.astype(jnp.bfloat16)
    qkv = jnp.dot(x_bf, wqkv_ref[0],
                  preferred_element_type=jnp.float32) + b_qkv   # (BT, 3C) f32

    # ---- head-stack Q/K/V as (H*BT, DH); rows ordered h*BT + (b*T + t) -----
    def stack_heads(col0):
        return jnp.concatenate(
            [qkv[:, col0 + hh * DH: col0 + (hh + 1) * DH] for hh in range(N_HEAD)],
            axis=0)                                       # (HBT, DH) f32

    q_s = stack_heads(0 * C)
    k_s = stack_heads(1 * C)
    v_s = stack_heads(2 * C)

    # ---- one (HBT, HBT) score matmul + one 64-lane softmax -----------------
    # mask encodes head-block-diagonal, batch-block-diagonal AND causality
    # (-1e4 elsewhere -> exactly 0 after the max-subtracted exp).
    s = jnp.einsum('qd,kd->qk',
                   q_s.astype(jnp.bfloat16), k_s.astype(jnp.bfloat16),
                   preferred_element_type=jnp.float32)    # (HBT, HBT)
    s = s + mask_ref[...]
    s = s - jnp.max(s, axis=-1, keepdims=True)
    p = jnp.exp(s)
    p = p * pl.reciprocal(jnp.sum(p, axis=-1, keepdims=True), approx=True)

    ctx = jnp.dot(p.astype(jnp.bfloat16), v_s.astype(jnp.bfloat16),
                  preferred_element_type=jnp.float32)     # (HBT, DH)

    # ---- merge heads back to (BT, C) and apply c_proj as ONE K=C matmul ----
    ctx_m = jnp.concatenate(
        [ctx[hh * BT:(hh + 1) * BT, :] for hh in range(N_HEAD)], axis=1)  # (BT, C)
    a = jnp.dot(ctx_m.astype(jnp.bfloat16), cpw_ref[0],
                preferred_element_type=jnp.float32) + cpb

    # ---- n = ln_1(x + a) ----------------------------------------------------
    n = _layer_norm(x + a, ln1g, ln1b, LN_EPS)

    # ---- MLP: c_proj(gelu_new(c_fc(n)))   (resid dropout = identity) -------
    hid = jnp.dot(n.astype(jnp.bfloat16), fcw_ref[0],
                  preferred_element_type=jnp.float32) + fcb
    hid = _gelu_new(hid)
    m = jnp.dot(hid.astype(jnp.bfloat16), mpw_ref[0],
                preferred_element_type=jnp.float32) + mpb

    # ---- out = ln_2(n + m); keep residual resident for the next layer ------
    y = _layer_norm(n + m, ln2g, ln2b, LN_EPS)
    resid_ref[...] = y
    out_ref[...] = y.astype(out_ref.dtype)
    # TODO(synk): once n_embd >= 128, emit a 128-lane-dense output layout to
    # avoid masked partial stores on the (BT, C) result.


def _pack_layer(p):
    """Pack one Block's parameters into (wqkv, cpw, fcw, mpw, slab)."""
    inv = (1.0 / math.sqrt(DH)) if SCALE else 1.0
    caw = p["c_attn_w"].astype(jnp.float32)               # (C, 3C) Conv1D (nx, nf)
    cab = p["c_attn_b"].astype(jnp.float32)                # (3C,)
    # fold 1/sqrt(DH) into the Q columns/bias (equivalent to scaling scores)
    wqkv = jnp.concatenate([caw[:, :C] * inv, caw[:, C:]],
                           axis=1).astype(jnp.bfloat16)    # (C, 3C)
    b_qkv = jnp.concatenate([cab[:C] * inv, cab[C:]])      # (3C,)

    slab = jnp.zeros((8, 128), jnp.float32)
    slab = slab.at[0, 0:3 * C].set(b_qkv)
    slab = slab.at[1, 0:N_STATE].set(p["c_fc_b"].astype(jnp.float32))
    slab = slab.at[2, 0:C].set(p["attn_proj_b"].astype(jnp.float32))
    slab = slab.at[3, 0:C].set(p["mlp_proj_b"].astype(jnp.float32))
    slab = slab.at[4, 0:C].set(p["ln1_g"].astype(jnp.float32))
    slab = slab.at[5, 0:C].set(p["ln1_b"].astype(jnp.float32))
    slab = slab.at[6, 0:C].set(p["ln2_g"].astype(jnp.float32))
    slab = slab.at[7, 0:C].set(p["ln2_b"].astype(jnp.float32))

    return (wqkv,
            p["attn_proj_w"].astype(jnp.bfloat16),          # (C, C)
            p["c_fc_w"].astype(jnp.bfloat16),               # (C, 4C)
            p["mlp_proj_w"].astype(jnp.bfloat16),           # (4C, C)
            slab)


def _head_causal_mask(causal_bias):
    # additive mask over head-stacked rows (h*BT + b*T + t): causal within a
    # (head, batch) block, -1e4 everywhere else.
    causal = causal_bias[:T, :T].astype(jnp.float32)        # registered buffer
    allowed = jnp.kron(jnp.eye(N_HEAD, dtype=jnp.float32),
                       jnp.kron(jnp.eye(B, dtype=jnp.float32), causal))
    return (allowed - 1.0) * 10000.0                         # (HBT, HBT)


@jax.jit
def gpt_blocks_forward(x, params_list):
    """Run a stack of Blocks in ONE pallas_call; x: (B, T, C) f32."""
    num_layers = len(params_list)
    packed = [_pack_layer(p) for p in params_list]
    wqkv = jnp.stack([t[0] for t in packed])                 # (L, C, 3C) bf16
    cpw = jnp.stack([t[1] for t in packed])                  # (L, C, C)  bf16
    fcw = jnp.stack([t[2] for t in packed])                  # (L, C, 4C) bf16
    mpw = jnp.stack([t[3] for t in packed])                  # (L, 4C, C) bf16
    slab = jnp.stack([t[4] for t in packed])                 # (L, 8, 128) f32
    mask = _head_causal_mask(params_list[0]["causal_bias"])  # (HBT, HBT) f32
    x2 = x.reshape(BT, C).astype(jnp.float32)

    out2 = pl.pallas_call(
        block_kernel,
        out_shape=jax.ShapeDtypeStruct((BT, C), jnp.float32),
        grid_spec=pltpu.PrefetchScalarGridSpec(
            num_scalar_prefetch=0,
            grid=(num_layers,),                 # layer axis: weights pipelined,
                                                # residual resident in scratch
            in_specs=[
                pl.BlockSpec((BT, C), lambda l: (0, 0)),            # x
                pl.BlockSpec((1, C, 3 * C), lambda l: (l, 0, 0)),   # fused QKV W
                pl.BlockSpec((1, C, C), lambda l: (l, 0, 0)),       # attn c_proj W
                pl.BlockSpec((1, C, N_STATE), lambda l: (l, 0, 0)), # c_fc W
                pl.BlockSpec((1, N_STATE, C), lambda l: (l, 0, 0)), # mlp c_proj W
                pl.BlockSpec((1, 8, 128), lambda l: (l, 0, 0)),     # scalar slab
                pl.BlockSpec((HBT, HBT), lambda l: (0, 0)),         # mask (shared)
            ],
            out_specs=pl.BlockSpec((BT, C), lambda l: (0, 0)),
            scratch_shapes=[pltpu.VMEM((BT, C), jnp.float32)],      # residual
        ),
        compiler_params=pltpu.CompilerParams(
            dimension_semantics=("arbitrary",)),   # sequential layers, 1 TC
    )(x2, wqkv, cpw, fcw, mpw, slab, mask)
    return out2.reshape(B, T, C)


def gpt_block_forward(x, params):
    """Single `Block.forward` (eval mode): x (B, T, C) f32 -> (B, T, C) f32."""
    return gpt_blocks_forward(x, [params])


def init_params(key):
    ks = jax.random.split(key, 4)
    std = 0.02
    return {
        # Attention: Conv1D(3*nx, nx) and Conv1D(nx, nx) — weight layout (nx, nf)
        "c_attn_w": jax.random.normal(ks[0], (C, 3 * C), jnp.float32) * std,
        "c_attn_b": jnp.zeros((3 * C,), jnp.float32),
        "attn_proj_w": jax.random.normal(ks[1], (C, C), jnp.float32) * std,
        "attn_proj_b": jnp.zeros((C,), jnp.float32),
        # LayerNorms
        "ln1_g": jnp.ones((C,), jnp.float32),
        "ln1_b": jnp.zeros((C,), jnp.float32),
        "ln2_g": jnp.ones((C,), jnp.float32),
        "ln2_b": jnp.zeros((C,), jnp.float32),
        # MLP: Conv1D(4*nx, nx) and Conv1D(nx, 4*nx)
        "c_fc_w": jax.random.normal(ks[2], (C, N_STATE), jnp.float32) * std,
        "c_fc_b": jnp.zeros((N_STATE,), jnp.float32),
        "mlp_proj_w": jax.random.normal(ks[3], (N_STATE, C), jnp.float32) * std,
        "mlp_proj_b": jnp.zeros((C,), jnp.float32),
        # registered buffer: tril(ones(n_positions, n_positions))
        "causal_bias": jnp.tril(jnp.ones((T, T), jnp.float32)),
    }


def block_reference(x, params):
    """Pure-JAX f32 reference of Block.forward (eval mode)."""
    h = x.reshape(BT, C).astype(jnp.float32)
    qkv = h @ params["c_attn_w"] + params["c_attn_b"]
    q, k, v = jnp.split(qkv, 3, axis=-1)

    def split_heads(t):  # (BT, C) -> (B, H, T, DH)
        return t.reshape(B, T, N_HEAD, DH).transpose(0, 2, 1, 3)

    q, k, v = split_heads(q), split_heads(k), split_heads(v)
    w = jnp.einsum('bhqd,bhkd->bhqk', q, k)
    if SCALE:
        w = w / math.sqrt(DH)
    bias = params["causal_bias"][:T, :T]
    w = w * bias + -10000.0 * (1.0 - bias)
    w = jax.nn.softmax(w, axis=-1)
    ctx = jnp.einsum('bhqk,bhkd->bhqd', w, v)
    ctx = ctx.transpose(0, 2, 1, 3).reshape(BT, C)
    a = ctx @ params["attn_proj_w"] + params["attn_proj_b"]

    def ln(v_, g, b_):
        mu = v_.mean(-1, keepdims=True)
        var = ((v_ - mu) ** 2).mean(-1, keepdims=True)
        return (v_ - mu) / jnp.sqrt(var + LN_EPS) * g + b_

    n = ln(h + a, params["ln1_g"], params["ln1_b"])
    hid = _gelu_new(n @ params["c_fc_w"] + params["c_fc_b"])
    m = hid @ params["mlp_proj_w"] + params["mlp_proj_b"]
    y = ln(n + m, params["ln2_g"], params["ln2_b"])
    return y.reshape(B, T, C)


if __name__ == "__main__":
    key = jax.random.PRNGKey(0)
    kx, kp = jax.random.split(key)
    x = jax.random.normal(kx, (B, T, C), jnp.float32)
    params = init_params(kp)

    out = gpt_block_forward(x, params)
    out = jax.block_until_ready(out)

    assert out.shape == (B, T, C) and out.dtype == jnp.float32
    assert bool(jnp.all(jnp.isfinite(out)))
    # loose tolerance: bf16 MXU inputs + approx-reciprocal softmax vs f32 ref
    ref = block_reference(x, params)
    max_err = float(jnp.max(jnp.abs(out - ref)))
    assert max_err < 0.15, f"kernel mismatch vs f32 reference: {max_err}"
    print("KERNEL_OK")
</pallas_src>

<mosaic_0001>
module attributes {stable_mosaic.version = 11 : i64} {
  func.func @block_kernel(%arg0: i32, %arg1: memref<16x32xf32, #tpu.memory_space<vmem>>, %arg2: memref<1x32x96xbf16, #tpu.memory_space<vmem>>, %arg3: memref<1x32x32xbf16, #tpu.memory_space<vmem>>, %arg4: memref<1x32x128xbf16, #tpu.memory_space<vmem>>, %arg5: memref<1x128x32xbf16, #tpu.memory_space<vmem>>, %arg6: memref<1x8x128xf32, #tpu.memory_space<vmem>>, %arg7: memref<64x64xf32, #tpu.memory_space<vmem>>, %arg8: memref<16x32xf32, #tpu.memory_space<vmem>>, %arg9: memref<16x32xf32, #tpu.memory_space<vmem>>) attributes {dimension_semantics = [#tpu.dimension_semantics<arbitrary>], iteration_bounds = array<i64: 1>, scalar_prefetch = 0 : i64, scratch_operands = 1 : i64, tpu.core_type = #tpu.core_type<tc>, window_params = [{pipeline_mode = #tpu.pipeline_mode<synchronous>, transform_indices = @transform_0, window_bounds = array<i64: 16, 32>}, {transform_indices = @transform_1, window_bounds = array<i64: 1, 32, 96>}, {transform_indices = @transform_2, window_bounds = array<i64: 1, 32, 32>}, {transform_indices = @transform_3, window_bounds = array<i64: 1, 32, 128>}, {transform_indices = @transform_4, window_bounds = array<i64: 1, 128, 32>}, {transform_indices = @transform_5, window_bounds = array<i64: 1, 8, 128>}, {pipeline_mode = #tpu.pipeline_mode<synchronous>, transform_indices = @transform_6, window_bounds = array<i64: 64, 64>}, {pipeline_mode = #tpu.pipeline_mode<synchronous>, transform_indices = @transform_7, window_bounds = array<i64: 16, 32>}]} {
    %c0_i32 = arith.constant 0 : i32
    %0 = arith.cmpi eq, %arg0, %c0_i32 : i32
    %1 = arith.extui %0 : i1 to i32
    %c0_i32_0 = arith.constant 0 : i32
    %2 = arith.cmpi ne, %1, %c0_i32_0 : i32
    scf.if %2 {
      %c0_44 = arith.constant 0 : index
      %c0_45 = arith.constant 0 : index
      %137 = vector.load %arg1[%c0_44, %c0_45] : memref<16x32xf32, #tpu.memory_space<vmem>>, vector<16x32xf32>
      %c0_46 = arith.constant 0 : index
      %c0_47 = arith.constant 0 : index
      %138 = vector.load %arg9[%c0_46, %c0_47] : memref<16x32xf32, #tpu.memory_space<vmem>>, vector<16x32xf32>
      tpu.vector_store %arg9[%c0_46, %c0_47], %137 {strides = array<i32>} : memref<16x32xf32, #tpu.memory_space<vmem>>, vector<16x32xf32>,
    } else {
    }
    %c0 = arith.constant 0 : index
    %c0_1 = arith.constant 0 : index
    %3 = vector.load %arg9[%c0, %c0_1] : memref<16x32xf32, #tpu.memory_space<vmem>>, vector<16x32xf32>
    %c0_2 = arith.constant 0 : index
    %c0_3 = arith.constant 0 : index
    %c0_4 = arith.constant 0 : index
    %4 = vector.load %arg6[%c0_2, %c0_3, %c0_4] : memref<1x8x128xf32, #tpu.memory_space<vmem>>, vector<1x8x128xf32>
    %5 = vector.shape_cast %4 : vector<1x8x128xf32> to vector<8x128xf32>
    %6 = vector.extract_strided_slice %5 {offsets = [0, 0], sizes = [1, 96], strides = [1, 1]} : vector<8x128xf32> to vector<1x96xf32>
    %7 = vector.extract_strided_slice %5 {offsets = [1, 0], sizes = [1, 128], strides = [1, 1]} : vector<8x128xf32> to vector<1x128xf32>
    %8 = vector.extract_strided_slice %5 {offsets = [2, 0], sizes = [1, 32], strides = [1, 1]} : vector<8x128xf32> to vector<1x32xf32>
    %9 = vector.extract_strided_slice %5 {offsets = [3, 0], sizes = [1, 32], strides = [1, 1]} : vector<8x128xf32> to vector<1x32xf32>
    %10 = vector.extract_strided_slice %5 {offsets = [4, 0], sizes = [1, 32], strides = [1, 1]} : vector<8x128xf32> to vector<1x32xf32>
    %11 = vector.extract_strided_slice %5 {offsets = [5, 0], sizes = [1, 32], strides = [1, 1]} : vector<8x128xf32> to vector<1x32xf32>
    %12 = vector.extract_strided_slice %5 {offsets = [6, 0], sizes = [1, 32], strides = [1, 1]} : vector<8x128xf32> to vector<1x32xf32>
    %13 = vector.extract_strided_slice %5 {offsets = [7, 0], sizes = [1, 32], strides = [1, 1]} : vector<8x128xf32> to vector<1x32xf32>
    %14 = arith.truncf %3 : vector<16x32xf32> to vector<16x32xbf16>
    %c0_5 = arith.constant 0 : index
    %c0_6 = arith.constant 0 : index
    %c0_7 = arith.constant 0 : index
    %15 = vector.load %arg2[%c0_5, %c0_6, %c0_7] : memref<1x32x96xbf16, #tpu.memory_space<vmem>>, vector<1x32x96xbf16>
    %16 = vector.shape_cast %15 : vector<1x32x96xbf16> to vector<32x96xbf16>
    %cst = arith.constant dense<0.000000e+00> : vector<16x96xf32>
    %17 = tpu.matmul %14, %16, %cst {dimension_numbers = #tpu.dot_dimension_numbers<[1], [0], [0], [1], [0, 0, 1, 1], [], []>} : vector<16x32xbf16>, vector<32x96xbf16>, vector<16x96xf32> -> vector<16x96xf32>
    %18 = vector.broadcast %6 : vector<1x96xf32> to vector<16x96xf32>
    %19 = arith.addf %17, %18 : vector<16x96xf32>
    %20 = vector.extract_strided_slice %19 {offsets = [0, 0], sizes = [16, 8], strides = [1, 1]} : vector<16x96xf32> to vector<16x8xf32>
    %21 = vector.extract_strided_slice %19 {offsets = [0, 8], sizes = [16, 8], strides = [1, 1]} : vector<16x96xf32> to vector<16x8xf32>
    %22 = vector.extract_strided_slice %19 {offsets = [0, 16], sizes = [16, 8], strides = [1, 1]} : vector<16x96xf32> to vector<16x8xf32>
    %23 = vector.extract_strided_slice %19 {offsets = [0, 24], sizes = [16, 8], strides = [1, 1]} : vector<16x96xf32> to vector<16x8xf32>
    %24 = tpu.concatenate %20, %21, %22, %23 in 0 : vector<16x8xf32>, vector<16x8xf32>, vector<16x8xf32>, vector<16x8xf32> -> vector<64x8xf32>
    %25 = vector.extract_strided_slice %19 {offsets = [0, 32], sizes = [16, 8], strides = [1, 1]} : vector<16x96xf32> to vector<16x8xf32>
    %26 = vector.extract_strided_slice %19 {offsets = [0, 40], sizes = [16, 8], strides = [1, 1]} : vector<16x96xf32> to vector<16x8xf32>
    %27 = vector.extract_strided_slice %19 {offsets = [0, 48], sizes = [16, 8], strides = [1, 1]} : vector<16x96xf32> to vector<16x8xf32>
    %28 = vector.extract_strided_slice %19 {offsets = [0, 56], sizes = [16, 8], strides = [1, 1]} : vector<16x96xf32> to vector<16x8xf32>
    %29 = tpu.concatenate %25, %26, %27, %28 in 0 : vector<16x8xf32>, vector<16x8xf32>, vector<16x8xf32>, vector<16x8xf32> -> vector<64x8xf32>
    %30 = vector.extract_strided_slice %19 {offsets = [0, 64], sizes = [16, 8], strides = [1, 1]} : vector<16x96xf32> to vector<16x8xf32>
    %31 = vector.extract_strided_slice %19 {offsets = [0, 72], sizes = [16, 8], strides = [1, 1]} : vector<16x96xf32> to vector<16x8xf32>
    %32 = vector.extract_strided_slice %19 {offsets = [0, 80], sizes = [16, 8], strides = [1, 1]} : vector<16x96xf32> to vector<16x8xf32>
    %33 = vector.extract_strided_slice %19 {offsets = [0, 88], sizes = [16, 8], strides = [1, 1]} : vector<16x96xf32> to vector<16x8xf32>
    %34 = tpu.concatenate %30, %31, %32, %33 in 0 : vector<16x8xf32>, vector<16x8xf32>, vector<16x8xf32>, vector<16x8xf32> -> vector<64x8xf32>
    %35 = arith.truncf %24 : vector<64x8xf32> to vector<64x8xbf16>
    %36 = arith.truncf %29 : vector<64x8xf32> to vector<64x8xbf16>
    "tpu.trace_start"() <{level = 10 : i32, message = "qd,kd->qk"}> : () -> ()
    %cst_8 = arith.constant dense<0.000000e+00> : vector<64x64xf32>
    %37 = tpu.matmul %35, %36, %cst_8 {dimension_numbers = #tpu.dot_dimension_numbers<[1], [1], [0], [0], [0, 0, 1, 0], [], []>} : vector<64x8xbf16>, vector<64x8xbf16>, vector<64x64xf32> -> vector<64x64xf32>
    "tpu.trace_stop"() : () -> ()
    %c0_9 = arith.constant 0 : index
    %c0_10 = arith.constant 0 : index
    %38 = vector.load %arg7[%c0_9, %c0_10] : memref<64x64xf32, #tpu.memory_space<vmem>>, vector<64x64xf32>
    %39 = arith.addf %37, %38 : vector<64x64xf32>
    %cst_11 = arith.constant dense<0xFF800000> : vector<64xf32>
    %40 = vector.multi_reduction <maximumf>, %39, %cst_11 [1] : vector<64x64xf32> to vector<64xf32>
    %41 = vector.shape_cast %40 : vector<64xf32> to vector<64x1xf32>
    %42 = vector.broadcast %41 : vector<64x1xf32> to vector<64x64xf32>
    %43 = arith.subf %39, %42 : vector<64x64xf32>
    %44 = math.exp %43 : vector<64x64xf32>
    %cst_12 = arith.constant dense<0.000000e+00> : vector<64xf32>
    %45 = vector.multi_reduction <add>, %44, %cst_12 [1] : vector<64x64xf32> to vector<64xf32>
    %46 = vector.shape_cast %45 : vector<64xf32> to vector<64x1xf32>
    %47 = tpu.reciprocal %46 {approx = true} : vector<64x1xf32> -> vector<64x1xf32>
    %48 = vector.broadcast %47 : vector<64x1xf32> to vector<64x64xf32>
    %49 = arith.mulf %44, %48 : vector<64x64xf32>
    %50 = arith.truncf %49 : vector<64x64xf32> to vector<64x64xbf16>
    %51 = arith.truncf %34 : vector<64x8xf32> to vector<64x8xbf16>
    %cst_13 = arith.constant dense<0.000000e+00> : vector<64x8xf32>
    %52 = tpu.matmul %50, %51, %cst_13 {dimension_numbers = #tpu.dot_dimension_numbers<[1], [0], [0], [1], [0, 0, 1, 1], [], []>} : vector<64x64xbf16>, vector<64x8xbf16>, vector<64x8xf32> -> vector<64x8xf32>
    %53 = vector.extract_strided_slice %52 {offsets = [0, 0], sizes = [16, 8], strides = [1, 1]} : vector<64x8xf32> to vector<16x8xf32>
    %54 = vector.extract_strided_slice %52 {offsets = [16, 0], sizes = [16, 8], strides = [1, 1]} : vector<64x8xf32> to vector<16x8xf32>
    %55 = vector.extract_strided_slice %52 {offsets = [32, 0], sizes = [16, 8], strides = [1, 1]} : vector<64x8xf32> to vector<16x8xf32>
    %56 = vector.extract_strided_slice %52 {offsets = [48, 0], sizes = [16, 8], strides = [1, 1]} : vector<64x8xf32> to vector<16x8xf32>
    %57 = tpu.concatenate %53, %54, %55, %56 in 1 : vector<16x8xf32>, vector<16x8xf32>, vector<16x8xf32>, vector<16x8xf32> -> vector<16x32xf32>
    %58 = arith.truncf %57 : vector<16x32xf32> to vector<16x32xbf16>
    %c0_14 = arith.constant 0 : index
    %c0_15 = arith.constant 0 : index
    %c0_16 = arith.constant 0 : index
    %59 = vector.load %arg3[%c0_14, %c0_15, %c0_16] : memref<1x32x32xbf16, #tpu.memory_space<vmem>>, vector<1x32x32xbf16>
    %60 = vector.shape_cast %59 : vector<1x32x32xbf16> to vector<32x32xbf16>
    %cst_17 = arith.constant dense<0.000000e+00> : vector<16x32xf32>
    %61 = tpu.matmul %58, %60, %cst_17 {dimension_numbers = #tpu.dot_dimension_numbers<[1], [0], [0], [1], [0, 0, 1, 1], [], []>} : vector<16x32xbf16>, vector<32x32xbf16>, vector<16x32xf32> -> vector<16x32xf32>
    %62 = vector.broadcast %8 : vector<1x32xf32> to vector<16x32xf32>
    %63 = arith.addf %61, %62 : vector<16x32xf32>
    %64 = arith.addf %3, %63 : vector<16x32xf32>
    %cst_18 = arith.constant dense<0.000000e+00> : vector<16xf32>
    %65 = vector.multi_reduction <add>, %64, %cst_18 [1] : vector<16x32xf32> to vector<16xf32>
    %66 = vector.shape_cast %65 : vector<16xf32> to vector<16x1xf32>
    %cst_19 = arith.constant 3.200000e+01 : f32
    %67 = vector.broadcast %cst_19 : f32 to vector<16x1xf32>
    %68 = arith.divf %66, %67 : vector<16x1xf32>
    %69 = vector.broadcast %68 : vector<16x1xf32> to vector<16x32xf32>
    %70 = arith.subf %64, %69 : vector<16x32xf32>
    %71 = arith.mulf %70, %70 : vector<16x32xf32>
    %cst_20 = arith.constant dense<0.000000e+00> : vector<16xf32>
    %72 = vector.multi_reduction <add>, %71, %cst_20 [1] : vector<16x32xf32> to vector<16xf32>
    %73 = vector.shape_cast %72 : vector<16xf32> to vector<16x1xf32>
    %cst_21 = arith.constant 3.200000e+01 : f32
    %74 = vector.broadcast %cst_21 : f32 to vector<16x1xf32>
    %75 = arith.divf %73, %74 : vector<16x1xf32>
    %76 = vector.broadcast %68 : vector<16x1xf32> to vector<16x32xf32>
    %77 = arith.subf %64, %76 : vector<16x32xf32>
    %cst_22 = arith.constant 9.99999974E-6 : f32
    %78 = vector.broadcast %cst_22 : f32 to vector<16x1xf32>
    %79 = arith.addf %75, %78 : vector<16x1xf32>
    %80 = math.rsqrt %79 : vector<16x1xf32>
    %81 = vector.broadcast %80 : vector<16x1xf32> to vector<16x32xf32>
    %82 = arith.mulf %77, %81 : vector<16x32xf32>
    %83 = vector.broadcast %10 : vector<1x32xf32> to vector<16x32xf32>
    %84 = arith.mulf %82, %83 : vector<16x32xf32>
    %85 = vector.broadcast %11 : vector<1x32xf32> to vector<16x32xf32>
    %86 = arith.addf %84, %85 : vector<16x32xf32>
    %87 = arith.truncf %86 : vector<16x32xf32> to vector<16x32xbf16>
    %c0_23 = arith.constant 0 : index
    %c0_24 = arith.constant 0 : index
    %c0_25 = arith.constant 0 : index
    %88 = vector.load %arg4[%c0_23, %c0_24, %c0_25] : memref<1x32x128xbf16, #tpu.memory_space<vmem>>, vector<1x32x128xbf16>
    %89 = vector.shape_cast %88 : vector<1x32x128xbf16> to vector<32x128xbf16>
    %cst_26 = arith.constant dense<0.000000e+00> : vector<16x128xf32>
    %90 = tpu.matmul %87, %89, %cst_26 {dimension_numbers = #tpu.dot_dimension_numbers<[1], [0], [0], [1], [0, 0, 1, 1], [], []>} : vector<16x32xbf16>, vector<32x128xbf16>, vector<16x128xf32> -> vector<16x128xf32>
    %91 = vector.broadcast %7 : vector<1x128xf32> to vector<16x128xf32>
    %92 = arith.addf %90, %91 : vector<16x128xf32>
    %cst_27 = arith.constant 5.000000e-01 : f32
    %93 = vector.broadcast %cst_27 : f32 to vector<16x128xf32>
    %94 = arith.mulf %93, %92 : vector<16x128xf32>
    %95 = arith.mulf %92, %92 : vector<16x128xf32>
    %96 = arith.mulf %92, %95 : vector<16x128xf32>
    %cst_28 = arith.constant 4.471500e-02 : f32
    %97 = vector.broadcast %cst_28 : f32 to vector<16x128xf32>
    %98 = arith.mulf %97, %96 : vector<16x128xf32>
    %99 = arith.addf %92, %98 : vector<16x128xf32>
    %cst_29 = arith.constant 0.797884583 : f32
    %100 = vector.broadcast %cst_29 : f32 to vector<16x128xf32>
    %101 = arith.mulf %100, %99 : vector<16x128xf32>
    %102 = math.tanh %101 : vector<16x128xf32>
    %cst_30 = arith.constant 1.000000e+00 : f32
    %103 = vector.broadcast %cst_30 : f32 to vector<16x128xf32>
    %104 = arith.addf %103, %102 : vector<16x128xf32>
    %105 = arith.mulf %94, %104 : vector<16x128xf32>
    %106 = arith.truncf %105 : vector<16x128xf32> to vector<16x128xbf16>
    %c0_31 = arith.constant 0 : index
    %c0_32 = arith.constant 0 : index
    %c0_33 = arith.constant 0 : index
    %107 = vector.load %arg5[%c0_31, %c0_32, %c0_33] : memref<1x128x32xbf16, #tpu.memory_space<vmem>>, vector<1x128x32xbf16>
    %108 = vector.shape_cast %107 : vector<1x128x32xbf16> to vector<128x32xbf16>
    %cst_34 = arith.constant dense<0.000000e+00> : vector<16x32xf32>
    %109 = tpu.matmul %106, %108, %cst_34 {dimension_numbers = #tpu.dot_dimension_numbers<[1], [0], [0], [1], [0, 0, 1, 1], [], []>} : vector<16x128xbf16>, vector<128x32xbf16>, vector<16x32xf32> -> vector<16x32xf32>
    %110 = vector.broadcast %9 : vector<1x32xf32> to vector<16x32xf32>
    %111 = arith.addf %109, %110 : vector<16x32xf32>
    %112 = arith.addf %86, %111 : vector<16x32xf32>
    %cst_35 = arith.constant dense<0.000000e+00> : vector<16xf32>
    %113 = vector.multi_reduction <add>, %112, %cst_35 [1] : vector<16x32xf32> to vector<16xf32>
    %114 = vector.shape_cast %113 : vector<16xf32> to vector<16x1xf32>
    %cst_36 = arith.constant 3.200000e+01 : f32
    %115 = vector.broadcast %cst_36 : f32 to vector<16x1xf32>
    %116 = arith.divf %114, %115 : vector<16x1xf32>
    %117 = vector.broadcast %116 : vector<16x1xf32> to vector<16x32xf32>
    %118 = arith.subf %112, %117 : vector<16x32xf32>
    %119 = arith.mulf %118, %118 : vector<16x32xf32>
    %cst_37 = arith.constant dense<0.000000e+00> : vector<16xf32>
    %120 = vector.multi_reduction <add>, %119, %cst_37 [1] : vector<16x32xf32> to vector<16xf32>
    %121 = vector.shape_cast %120 : vector<16xf32> to vector<16x1xf32>
    %cst_38 = arith.constant 3.200000e+01 : f32
    %122 = vector.broadcast %cst_38 : f32 to vector<16x1xf32>
    %123 = arith.divf %121, %122 : vector<16x1xf32>
    %124 = vector.broadcast %116 : vector<16x1xf32> to vector<16x32xf32>
    %125 = arith.subf %112, %124 : vector<16x32xf32>
    %cst_39 = arith.constant 9.99999974E-6 : f32
    %126 = vector.broadcast %cst_39 : f32 to vector<16x1xf32>
    %127 = arith.addf %123, %126 : vector<16x1xf32>
    %128 = math.rsqrt %127 : vector<16x1xf32>
    %129 = vector.broadcast %128 : vector<16x1xf32> to vector<16x32xf32>
    %130 = arith.mulf %125, %129 : vector<16x32xf32>
    %131 = vector.broadcast %12 : vector<1x32xf32> to vector<16x32xf32>
    %132 = arith.mulf %130, %131 : vector<16x32xf32>
    %133 = vector.broadcast %13 : vector<1x32xf32> to vector<16x32xf32>
    %134 = arith.addf %132, %133 : vector<16x32xf32>
    %c0_40 = arith.constant 0 : index
    %c0_41 = arith.constant 0 : index
    %135 = vector.load %arg9[%c0_40, %c0_41] : memref<16x32xf32, #tpu.memory_space<vmem>>, vector<16x32xf32>
    tpu.vector_store %arg9[%c0_40, %c0_41], %134 {strides = array<i32>} : memref<16x32xf32, #tpu.memory_space<vmem>>, vector<16x32xf32>,
    %c0_42 = arith.constant 0 : index
    %c0_43 = arith.constant 0 : index
    %136 = vector.load %arg8[%c0_42, %c0_43] : memref<16x32xf32, #tpu.memory_space<vmem>>, vector<16x32xf32>
    tpu.vector_store %arg8[%c0_42, %c0_43], %134 {strides = array<i32>} : memref<16x32xf32, #tpu.memory_space<vmem>>, vector<16x32xf32>,
    return
  }
  func.func @transform_0(%arg0: i32) -> (i32, i32) {
    %c0_i32 = arith.constant 0 : i32
    %c0_i32_0 = arith.constant 0 : i32
    %c0_i32_1 = arith.constant 0 : i32
    return %c0_i32, %c0_i32_0 : i32, i32
  }
  func.func @transform_1(%arg0: i32) -> (i32, i32, i32) {
    %c0_i32 = arith.constant 0 : i32
    %c0_i32_0 = arith.constant 0 : i32
    %c0_i32_1 = arith.constant 0 : i32
    return %arg0, %c0_i32, %c0_i32_0 : i32, i32, i32
  }
  func.func @transform_2(%arg0: i32) -> (i32, i32, i32) {
    %c0_i32 = arith.constant 0 : i32
    %c0_i32_0 = arith.constant 0 : i32
    %c0_i32_1 = arith.constant 0 : i32
    return %arg0, %c0_i32, %c0_i32_0 : i32, i32, i32
  }
  func.func @transform_3(%arg0: i32) -> (i32, i32, i32) {
    %c0_i32 = arith.constant 0 : i32
    %c0_i32_0 = arith.constant 0 : i32
    %c0_i32_1 = arith.constant 0 : i32
    return %arg0, %c0_i32, %c0_i32_0 : i32, i32, i32
  }
  func.func @transform_4(%arg0: i32) -> (i32, i32, i32) {
    %c0_i32 = arith.constant 0 : i32
    %c0_i32_0 = arith.constant 0 : i32
    %c0_i32_1 = arith.constant 0 : i32
    return %arg0, %c0_i32, %c0_i32_0 : i32, i32, i32
  }
  func.func @transform_5(%arg0: i32) -> (i32, i32, i32) {
    %c0_i32 = arith.constant 0 : i32
    %c0_i32_0 = arith.constant 0 : i32
    %c0_i32_1 = arith.constant 0 : i32
    return %arg0, %c0_i32, %c0_i32_0 : i32, i32, i32
  }
  func.func @transform_6(%arg0: i32) -> (i32, i32) {
    %c0_i32 = arith.constant 0 : i32
    %c0_i32_0 = arith.constant 0 : i32
    %c0_i32_1 = arith.constant 0 : i32
    return %c0_i32, %c0_i32_0 : i32, i32
  }
  func.func @transform_7(%arg0: i32) -> (i32, i32) {
    %c0_i32 = arith.constant 0 : i32
    %c0_i32_0 = arith.constant 0 : i32
    %c0_i32_1 = arith.constant 0 : i32
    return %c0_i32, %c0_i32_0 : i32, i32
  }
}

</mosaic_0001>

<llo_original>
// kernel: gpt_blocks_forward.1
$region0: #{gpt_blocks_forward.1}
  #allocation0 [shape = 'u32[]', space=smem, size = 0x4, offset = 0x4, fixed_abs, tag = 'smem constant byte address 0x4 - core index']
  #allocation1 [shape = 'u32[72,128]{1,0:T(1,128)}', space=vmem, size = 0x9000, scoped, tag = 'internal scratch']
  #allocation2 [shape = 'f32[16,32]{1,0:T(8,128)}', space=vmem, size = 0x2000, scoped, tag = 'scratch operand']
  %s0 = inlined_call_operand.vmem [shape: f32[16,32], index: 0, kind: input, shape index: {}]
  %s1 = inlined_call_operand.vmem [shape: bf16[1,32,96], index: 1, kind: input, shape index: {}]
  %s2 = inlined_call_operand.vmem [shape: bf16[1,32,32], index: 2, kind: input, shape index: {}]
  %s3 = inlined_call_operand.vmem [shape: bf16[1,32,128], index: 3, kind: input, shape index: {}]
  %s4 = inlined_call_operand.vmem [shape: bf16[1,128,32], index: 4, kind: input, shape index: {}]
  %s5 = inlined_call_operand.vmem [shape: f32[1,8,128], index: 5, kind: input, shape index: {}]
  %s6 = inlined_call_operand.vmem [shape: f32[64,64], index: 6, kind: input, shape index: {}]
  %s7 = inlined_call_operand.hbm [shape: f32[16,32], index: 7, kind: output, shape index: {}]
  %s8 = sld [smem:[#allocation0]]
  $region42: #{gpt_blocks_forward.1} parent=0
    _
  %s10 = ssub.s32 1, %s8
  %s11 = scalar_select 0, %s10, %s8
  $region1: #{gpt_blocks_forward.1} parent=0
    #allocation3 [shape = 'u8[8192]{0}', space=vmem, size = 0x2000, scoped, tag = 'output window, operand 0, single buffered']
    #allocation4 [shape = 's32[1]{0}', space=sflag, size = 0x4, scoped, tag = 'scoped memory for gpt_blocks_forward.1']
    %12 = vsyncpa [#allocation4], 0
    // Predicated region
    $region2: #{gpt_blocks_forward.1} parent=1 // pred_check
      _
    $region3: #{gpt_blocks_forward.1} parent=1 // pred_check_branch
      %14 = sbr.rel (0) target = $region5
    $region4: #{gpt_blocks_forward.1} parent=1 // pred_region
      _
    $region5: #{gpt_blocks_forward.1} parent=1 // pred_fallthru
      _
    // Predicated region
    $region6: #{gpt_blocks_forward.1} parent=1 // pred_check
      _
    $region7: #{gpt_blocks_forward.1} parent=1 // pred_check_branch
      %16 = sbr.rel (0) target = $region9
    $region8: #{gpt_blocks_forward.1} parent=1 // pred_region
      _
    $region9: #{gpt_blocks_forward.1} parent=1 // pred_fallthru
      _
    // Predicated region
    $region10: #{gpt_blocks_forward.1} parent=1 // pred_check
      _
    $region11: #{gpt_blocks_forward.1} parent=1 // pred_check_branch
      %18 = sbr.rel (0) target = $region13
    $region12: #{gpt_blocks_forward.1} parent=1 // pred_region
      _
    $region13: #{gpt_blocks_forward.1} parent=1 // pred_fallthru
      _
    // Predicated region
    $region14: #{gpt_blocks_forward.1} parent=1 // pred_check
      _
    $region15: #{gpt_blocks_forward.1} parent=1 // pred_check_branch
      %20 = sbr.rel (0) target = $region17
    $region16: #{gpt_blocks_forward.1} parent=1 // pred_region
      _
    $region17: #{gpt_blocks_forward.1} parent=1 // pred_fallthru
      _
    // Predicated region
    $region18: #{gpt_blocks_forward.1} parent=1 // pred_check
      _
    $region19: #{gpt_blocks_forward.1} parent=1 // pred_check_branch
      %22 = sbr.rel (0) target = $region21
    $region20: #{gpt_blocks_forward.1} parent=1 // pred_region
      _
    $region21: #{gpt_blocks_forward.1} parent=1 // pred_fallthru
      _
    // Predicated region
    $region22: #{gpt_blocks_forward.1} parent=1 // pred_check
      _
    $region23: #{gpt_blocks_forward.1} parent=1 // pred_check_branch
      %24 = sbr.rel (0) target = $region25
    $region24: #{gpt_blocks_forward.1} parent=1 // pred_region
      _
    $region25: #{gpt_blocks_forward.1} parent=1 // pred_fallthru
      _
    // Predicated region
    $region26: #{gpt_blocks_forward.1} parent=1 // pred_check
      _
    $region27: #{gpt_blocks_forward.1} parent=1 // pred_check_branch
      %26 = sbr.rel (0) target = $region29
    $region28: #{gpt_blocks_forward.1} parent=1 // pred_region
      _
    $region29: #{gpt_blocks_forward.1} parent=1 // pred_fallthru
      _
    %p28 = scmp.eq.s32.totalorder 0, 0
    // Predicated region
    $region30: #{gpt_blocks_forward.1} parent=1 // pred_check
      %p29 = pneg %p28
    $region31: #{gpt_blocks_forward.1} parent=1 // pred_check_branch
      %31 = sbr.rel (%p29) target = $region33
    $region32: #{gpt_blocks_forward.1} parent=1 // pred_region
      %v32 = vld [vmem:[%s0] sm:$0xff]
      %v33 = vld [vmem:[%s0 + $0x8] sm:$0xff]
      %vm34 = vcmask 261120
      %35 = vst.msk [vmem:[#allocation2] sm:$0xff] %vm34, %v32
      %36 = vst.msk [vmem:[#allocation2 + $0x8] sm:$0xff] %vm34, %v33
    $region33: #{gpt_blocks_forward.1} parent=1 // pred_fallthru
      _
    %v37 = vld [vmem:[#allocation2] sm:$0xff]
    %v38 = vld [vmem:[#allocation2 + $0x8] sm:$0xff]
    %v39 = vld [vmem:[%s5] sm:$0xff]
    %v40 = vpack.c.bf16 %v38, %v37
    %v41 = vld [vmem:[%s1] sm:$0xf]
    %v42 = vld [vmem:[%s1 + $0x4] sm:$0xf]
    %v43 = vld [vmem:[%s1 + $0x8] sm:$0xf]
    %v44 = vld [vmem:[%s1 + $0xc] sm:$0xf]
    %v45 = vperm.slane %v39, 0
    %v50 = vunpack.c.l.b16 %v41
    %v51 = vunpack.c.l.b16 %v42
    %v52 = vunpack.c.l.b16 %v43
    %v53 = vunpack.c.l.b16 %v44
    %v54 = vpack.c.b16 %v51, %v50
    %v55 = vpack.c.b16 %v53, %v52
    %vm58 = vcmask 261120
    %v60 = vsel %vm58, %v40, 0
    %62 = vmatpush.bf16.msra.mxu0 0
    %63 = vmatpush.bf16.msra.mxu0 0
    %64 = vmatpush.bf16.msra.mxu0 0
    %65 = vmatpush.bf16.msra.mxu0 0
    %66 = vmatpush.bf16.msra.mxu0 0
    %67 = vmatpush.bf16.msra.mxu0 0
    %68 = vmatpush.bf16.msra.mxu0 %v55
    %69 = vmatpush.bf16.msra.mxu0 %v54
    %70 = vmatmul.bf16.gmra.mxu0 %v60
    %v71 = vpop.f32.mrf.mxu0
    %v72 = vadd.f32 %v45, %v71
    %v73 = vpop.f32.mrf.mxu0
    %v74 = vadd.f32 %v45, %v73
    %75 = vdwg.mxu0
    %78 = vrot.lane.b32.xlu0 %v72, 120
    %v79 = vpop.permute.xlu0 %78
    %80 = vrot.lane.b32.xlu0 %v74, 120
    %v81 = vpop.permute.xlu0 %80
    %84 = vrot.lane.b32.xlu0 %v72, 112
    %v85 = vpop.permute.xlu0 %84
    %86 = vrot.lane.b32.xlu0 %v74, 112
    %v87 = vpop.permute.xlu0 %86
    %90 = vrot.lane.b32.xlu0 %v72, 104
    %v91 = vpop.permute.xlu0 %90
    %92 = vrot.lane.b32.xlu0 %v74, 104
    %v93 = vpop.permute.xlu0 %92
    %v96 = vpack.c.bf16 %v74, %v72
    %v97 = vpack.c.bf16 %v81, %v79
    %v98 = vpack.c.bf16 %v87, %v85
    %v99 = vpack.c.bf16 %v93, %v91
    %v100 = vld [vmem:[%s6] sm:$0xff]
    %v101 = vld [vmem:[%s6 + $0x8] sm:$0xff]
    %v102 = vld [vmem:[%s6 + $0x10] sm:$0xff]
    %v103 = vld [vmem:[%s6 + $0x18] sm:$0xff]
    %v104 = vld [vmem:[%s6 + $0x20] sm:$0xff]
    %v105 = vld [vmem:[%s6 + $0x28] sm:$0xff]
    %v106 = vld [vmem:[%s6 + $0x30] sm:$0xff]
    %v107 = vld [vmem:[%s6 + $0x38] sm:$0xff]
    %112 = vrot.lane.b32.xlu0 %v96, 96
    %v113 = vpop.permute.xlu0 %112
    %114 = vrot.lane.b32.xlu0 %v97, 96
    %v115 = vpop.permute.xlu0 %114
    %116 = vrot.lane.b32.xlu0 %v98, 96
    %v117 = vpop.permute.xlu0 %116
    %118 = vrot.lane.b32.xlu0 %v99, 96
    %v119 = vpop.permute.xlu0 %118
    %vm120 = vcmask 64512
    %v122 = vsel %vm120, %v96, 0
    %v125 = vsel %vm120, %v97, 0
    %v128 = vsel %vm120, %v98, 0
    %v131 = vsel %vm120, %v99, 0
    %v134 = vsel %vm120, %v113, 0
    %v137 = vsel %vm120, %v115, 0
    %v140 = vsel %vm120, %v117, 0
    %v143 = vsel %vm120, %v119, 0
    %145 = vmatpush.bf16.xpose.msra.mxu0 0
    %146 = vmatpush.bf16.xpose.msra.mxu0 0
    %147 = vmatpush.bf16.xpose.msra.mxu0 0
    %148 = vmatpush.bf16.xpose.msra.mxu0 0
    %149 = vmatpush.bf16.xpose.msra.mxu0 %v143
    %150 = vmatpush.bf16.xpose.msra.mxu0 %v140
    %151 = vmatpush.bf16.xpose.msra.mxu0 %v137
    %152 = vmatpush.bf16.xpose.msra.mxu0 %v134
    %153 = vmatmul.bf16.gmra.mxu0 %v122
    %v154 = vpop.f32.mrf.mxu0
    %v155 = vadd.f32 %v100, %v154
    %v156 = vpop.f32.mrf.mxu0
    %v157 = vadd.f32 %v101, %v156
    %158 = vmatmul.bf16.gmra.mxu0 %v125
    %v159 = vpop.f32.mrf.mxu0
    %v160 = vadd.f32 %v102, %v159
    %v161 = vpop.f32.mrf.mxu0
    %v162 = vadd.f32 %v103, %v161
    %163 = vmatmul.bf16.gmra.mxu0 %v128
    %v164 = vpop.f32.mrf.mxu0
    %v165 = vadd.f32 %v104, %v164
    %v166 = vpop.f32.mrf.mxu0
    %v167 = vadd.f32 %v105, %v166
    %168 = vmatmul.bf16.gmra.mxu0 %v131
    %v169 = vpop.f32.mrf.mxu0
    %v170 = vadd.f32 %v106, %v169
    %v171 = vpop.f32.mrf.mxu0
    %v172 = vadd.f32 %v107, %v171
    %173 = vdwg.mxu0
    %vm174 = vcmask 523264
    %v175 = vsel %vm174, %v155, -inf
    %176 = vmax.xlane.f32.xlu0 %v175
    %v177 = vpop.xlane.xlu0 %176
    %v178 = vsel %vm174, %v157, -inf
    %179 = vmax.xlane.f32.xlu0 %v178
    %v180 = vpop.xlane.xlu0 %179
    %v181 = vsel %vm174, %v160, -inf
    %182 = vmax.xlane.f32.xlu0 %v181
    %v183 = vpop.xlane.xlu0 %182
    %v184 = vsel %vm174, %v162, -inf
    %185 = vmax.xlane.f32.xlu0 %v184
    %v186 = vpop.xlane.xlu0 %185
    %v187 = vsel %vm174, %v165, -inf
    %188 = vmax.xlane.f32.xlu0 %v187
    %v189 = vpop.xlane.xlu0 %188
    %v190 = vsel %vm174, %v167, -inf
    %191 = vmax.xlane.f32.xlu0 %v190
    %v192 = vpop.xlane.xlu0 %191
    %v193 = vsel %vm174, %v170, -inf
    %194 = vmax.xlane.f32.xlu0 %v193
    %v195 = vpop.xlane.xlu0 %194
    %v196 = vsel %vm174, %v172, -inf
    %197 = vmax.xlane.f32.xlu0 %v196
    %v198 = vpop.xlane.xlu0 %197
    %v199 = vsub.f32 %v155, %v177
    %v200 = vsub.f32 %v157, %v180
    %v201 = vsub.f32 %v160, %v183
    %v202 = vsub.f32 %v162, %v186
    %v203 = vsub.f32 %v165, %v189
    %v204 = vsub.f32 %v167, %v192
    %v205 = vsub.f32 %v170, %v195
    %v206 = vsub.f32 %v172, %v198
    %v207 = vmul.f32 %v199, 1.442695
    %v208 = vpow.pop %v207
    %v209 = vmul.f32 %v200, 1.442695
    %v210 = vpow.pop %v209
    %v211 = vmul.f32 %v201, 1.442695
    %v212 = vpow.pop %v211
    %v213 = vmul.f32 %v202, 1.442695
    %v214 = vpow.pop %v213
    %v215 = vmul.f32 %v203, 1.442695
    %v216 = vpow.pop %v215
    %v217 = vmul.f32 %v204, 1.442695
    %v218 = vpow.pop %v217
    %v219 = vmul.f32 %v205, 1.442695
    %v220 = vpow.pop %v219
    %v221 = vmul.f32 %v206, 1.442695
    %v222 = vpow.pop %v221
    %v223 = vsel %vm174, %v208, 0.0
    %224 = vadd.xlane.f32.xlu0 %v223
    %v225 = vpop.xlane.xlu0 %224
    %v226 = vsel %vm174, %v210, 0.0
    %227 = vadd.xlane.f32.xlu0 %v226
    %v228 = vpop.xlane.xlu0 %227
    %v229 = vsel %vm174, %v212, 0.0
    %230 = vadd.xlane.f32.xlu0 %v229
    %v231 = vpop.xlane.xlu0 %230
    %v232 = vsel %vm174, %v214, 0.0
    %233 = vadd.xlane.f32.xlu0 %v232
    %v234 = vpop.xlane.xlu0 %233
    %v235 = vsel %vm174, %v216, 0.0
    %236 = vadd.xlane.f32.xlu0 %v235
    %v237 = vpop.xlane.xlu0 %236
    %v238 = vsel %vm174, %v218, 0.0
    %239 = vadd.xlane.f32.xlu0 %v238
    %v240 = vpop.xlane.xlu0 %239
    %v241 = vsel %vm174, %v220, 0.0
    %242 = vadd.xlane.f32.xlu0 %v241
    %v243 = vpop.xlane.xlu0 %242
    %v244 = vsel %vm174, %v222, 0.0
    %245 = vadd.xlane.f32.xlu0 %v244
    %v246 = vpop.xlane.xlu0 %245
    %v247 = vrcp.pop %v225
    %v248 = vrcp.pop %v228
    %v249 = vrcp.pop %v231
    %v250 = vrcp.pop %v234
    %v251 = vrcp.pop %v237
    %v252 = vrcp.pop %v240
    %v253 = vrcp.pop %v243
    %v254 = vrcp.pop %v246
    %v255 = vmul.f32 %v208, %v247
    %v256 = vmul.f32 %v210, %v248
    %v257 = vmul.f32 %v212, %v249
    %v258 = vmul.f32 %v214, %v250
    %v259 = vmul.f32 %v216, %v251
    %v260 = vmul.f32 %v218, %v252
    %v261 = vmul.f32 %v220, %v253
    %v262 = vmul.f32 %v222, %v254
    %v263 = vpack.c.bf16 %v256, %v255
    %v264 = vpack.c.bf16 %v258, %v257
    %v265 = vpack.c.bf16 %v260, %v259
    %v266 = vpack.c.bf16 %v262, %v261
    %267 = vrot.lane.b32.xlu0 %v96, 64
    %v268 = vpop.permute.xlu0 %267
    %269 = vrot.lane.b32.xlu0 %v97, 64
    %v270 = vpop.permute.xlu0 %269
    %271 = vrot.lane.b32.xlu0 %v98, 64
    %v272 = vpop.permute.xlu0 %271
    %273 = vrot.lane.b32.xlu0 %v99, 64
    %v274 = vpop.permute.xlu0 %273
    %v280 = vsel %vm174, %v263, 0
    %v283 = vsel %vm174, %v264, 0
    %v286 = vsel %vm174, %v265, 0
    %v289 = vsel %vm174, %v266, 0
    %291 = vmatpush.bf16.msra.mxu0 0
    %292 = vmatpush.bf16.msra.mxu0 0
    %293 = vmatpush.bf16.msra.mxu0 0
    %294 = vmatpush.bf16.msra.mxu0 0
    %295 = vmatpush.bf16.msra.mxu0 %v274
    %296 = vmatpush.bf16.msra.mxu0 %v272
    %297 = vmatpush.bf16.msra.mxu0 %v270
    %298 = vmatpush.bf16.msra.mxu0 %v268
    %299 = vmatmul.bf16.gmra.mxu0 %v280
    %v300 = vpop.f32.mrf.mxu0
    %v301 = vadd.f32 0.0, %v300
    %v302 = vpop.f32.mrf.mxu0
    %v303 = vadd.f32 0.0, %v302
    %304 = vmatmul.bf16.gmra.mxu0 %v283
    %v305 = vpop.f32.mrf.mxu0
    %v306 = vadd.f32 0.0, %v305
    %v307 = vpop.f32.mrf.mxu0
    %v308 = vadd.f32 0.0, %v307
    %309 = vmatmul.bf16.gmra.mxu0 %v286
    %v310 = vpop.f32.mrf.mxu0
    %v311 = vadd.f32 0.0, %v310
    %v312 = vpop.f32.mrf.mxu0
    %v313 = vadd.f32 0.0, %v312
    %314 = vmatmul.bf16.gmra.mxu0 %v289
    %v315 = vpop.f32.mrf.mxu0
    %v316 = vadd.f32 0.0, %v315
    %v317 = vpop.f32.mrf.mxu0
    %v318 = vadd.f32 0.0, %v317
    %319 = vdwg.mxu0
    %322 = vrot.lane.b32.xlu0 %v306, 8
    %v323 = vpop.permute.xlu0 %322
    %324 = vrot.lane.b32.xlu0 %v308, 8
    %v325 = vpop.permute.xlu0 %324
    %330 = vrot.lane.b32.xlu0 %v311, 16
    %v331 = vpop.permute.xlu0 %330
    %332 = vrot.lane.b32.xlu0 %v313, 16
    %v333 = vpop.permute.xlu0 %332
    %338 = vrot.lane.b32.xlu0 %v316, 24
    %v339 = vpop.permute.xlu0 %338
    %340 = vrot.lane.b32.xlu0 %v318, 24
    %v341 = vpop.permute.xlu0 %340
    %v344 = vsel %vm120, %v301, %v323
    %v345 = vsel %vm120, %v303, %v325
    %vm346 = vcmask 130048
    %v347 = vsel %vm346, %v344, %v331
    %v348 = vsel %vm346, %v345, %v333
    %vm349 = vcmask 195584
    %v350 = vsel %vm349, %v347, %v339
    %v351 = vsel %vm349, %v348, %v341
    %v352 = vpack.c.bf16 %v351, %v350
    %v353 = vld [vmem:[%s2] sm:$0xf]
    %v354 = vld [vmem:[%s2 + $0x4] sm:$0xf]
    %v355 = vld [vmem:[%s2 + $0x8] sm:$0xf]
    %v356 = vld [vmem:[%s2 + $0xc] sm:$0xf]
    %v357 = vperm.slane %v39, 2
    %v362 = vunpack.c.l.b16 %v353
    %v363 = vunpack.c.l.b16 %v354
    %v364 = vunpack.c.l.b16 %v355
    %v365 = vunpack.c.l.b16 %v356
    %v366 = vpack.c.b16 %v363, %v362
    %v367 = vpack.c.b16 %v365, %v364
    %v371 = vsel %vm58, %v352, 0
    %373 = vmatpush.bf16.msra.mxu0 0
    %374 = vmatpush.bf16.msra.mxu0 0
    %375 = vmatpush.bf16.msra.mxu0 0
    %376 = vmatpush.bf16.msra.mxu0 0
    %377 = vmatpush.bf16.msra.mxu0 0
    %378 = vmatpush.bf16.msra.mxu0 0
    %379 = vmatpush.bf16.msra.mxu0 %v367
    %380 = vmatpush.bf16.msra.mxu0 %v366
    %381 = vmatmul.bf16.gmra.mxu0 %v371
    %v382 = vpop.f32.mrf.mxu0
    %v383 = vadd.f32 %v357, %v382
    %v384 = vpop.f32.mrf.mxu0
    %v385 = vadd.f32 %v357, %v384
    %386 = vdwg.mxu0
    %v387 = vadd.f32 %v37, %v383
    %v388 = vadd.f32 %v38, %v385
    %v389 = vsel %vm58, %v387, 0.0
    %390 = vadd.xlane.f32.xlu0 %v389
    %v391 = vpop.xlane.xlu0 %390
    %v392 = vsel %vm58, %v388, 0.0
    %393 = vadd.xlane.f32.xlu0 %v392
    %v394 = vpop.xlane.xlu0 %393
    %v395 = vrcp.pop 32.0
    %v396 = vmul.f32 32.0, %v395
    %v397 = vsub.f32 1.0, %v396
    %v398 = vmul.f32 %v395, %v397
    %v399 = vadd.f32 %v395, %v398
    %vm400 = vweird.f32 %v395
    %v401 = vsel %vm400, %v395, %v399
    %v402 = vmul.f32 %v391, %v401
    %v403 = vmul.f32 %v394, %v401
    %v404 = vsub.f32 %v387, %v402
    %v405 = vsub.f32 %v388, %v403
    %v406 = vmul.f32 %v404, %v404
    %v407 = vmul.f32 %v405, %v405
    %v408 = vsel %vm58, %v406, 0.0
    %409 = vadd.xlane.f32.xlu0 %v408
    %v410 = vpop.xlane.xlu0 %409
    %v411 = vsel %vm58, %v407, 0.0
    %412 = vadd.xlane.f32.xlu0 %v411
    %v413 = vpop.xlane.xlu0 %412
    %v414 = vmul.f32 %v410, %v401
    %v415 = vmul.f32 %v413, %v401
    %v416 = vadd.f32 %v414, 1e-05
    %v417 = vadd.f32 %v415, 1e-05
    %v418 = vrsqrt.pop %v416
    %v419 = vmul.f32 %v418, %v416
    %v420 = vmul.f32 %v419, %v418
    %v421 = vmul.f32 0.5, %v420
    %v422 = vsub.f32 1.5, %v421
    %v423 = vmul.f32 %v418, %v422
    %vm424 = vweird.f32 %v416
    %vm425 = vweird.f32 %v418
    %vm426 = vmor %vm424, %vm425
    %v427 = vsel %vm426, %v418, %v423
    %v428 = vrsqrt.pop %v417
    %v429 = vmul.f32 %v428, %v417
    %v430 = vmul.f32 %v429, %v428
    %v431 = vmul.f32 0.5, %v430
    %v432 = vsub.f32 1.5, %v431
    %v433 = vmul.f32 %v428, %v432
    %vm434 = vweird.f32 %v417
    %vm435 = vweird.f32 %v428
    %vm436 = vmor %vm434, %vm435
    %v437 = vsel %vm436, %v428, %v433
    %v438 = vmul.f32 %v404, %v427
    %v439 = vmul.f32 %v405, %v437
    %v440 = vperm.slane %v39, 4
    %v441 = vmul.f32 %v438, %v440
    %v442 = vmul.f32 %v439, %v440
    %v443 = vperm.slane %v39, 5
    %v444 = vadd.f32 %v441, %v443
    %v445 = vadd.f32 %v442, %v443
    %v446 = vpack.c.bf16 %v445, %v444
    %v447 = vld [vmem:[%s3] sm:$0xf]
    %v448 = vld [vmem:[%s3 + $0x4] sm:$0xf]
    %v449 = vld [vmem:[%s3 + $0x8] sm:$0xf]
    %v450 = vld [vmem:[%s3 + $0xc] sm:$0xf]
    %v451 = vperm.slane %v39, 1
    %v456 = vunpack.c.l.b16 %v447
    %v457 = vunpack.c.l.b16 %v448
    %v458 = vunpack.c.l.b16 %v449
    %v459 = vunpack.c.l.b16 %v450
    %v460 = vpack.c.b16 %v457, %v456
    %v461 = vpack.c.b16 %v459, %v458
    %v465 = vsel %vm58, %v446, 0
    %467 = vmatpush.bf16.msra.mxu0 0
    %468 = vmatpush.bf16.msra.mxu0 0
    %469 = vmatpush.bf16.msra.mxu0 0
    %470 = vmatpush.bf16.msra.mxu0 0
    %471 = vmatpush.bf16.msra.mxu0 0
    %472 = vmatpush.bf16.msra.mxu0 0
    %473 = vmatpush.bf16.msra.mxu0 %v461
    %474 = vmatpush.bf16.msra.mxu0 %v460
    %475 = vmatmul.bf16.gmra.mxu0 %v465
    %v476 = vpop.f32.mrf.mxu0
    %v477 = vadd.f32 %v451, %v476
    %v478 = vpop.f32.mrf.mxu0
    %v479 = vadd.f32 %v451, %v478
    %480 = vdwg.mxu0
    %v481 = vmul.f32 %v477, 0.5
    %v482 = vmul.f32 %v479, 0.5
    %v483 = vmul.f32 %v477, %v477
    %v484 = vmul.f32 %v479, %v479
    %v485 = vmul.f32 %v477, %v483
    %v486 = vmul.f32 %v479, %v484
    %v487 = vmul.f32 %v485, 0.044715
    %v488 = vmul.f32 %v486, 0.044715
    %v489 = vadd.f32 %v477, %v487
    %v490 = vadd.f32 %v479, %v488
    %v491 = vmul.f32 %v489, 0.7978846
    %v492 = vmul.f32 %v490, 0.7978846
    %v493 = vtanh.pop %v491
    %v494 = vtanh.pop %v492
    %v495 = vadd.f32 %v493, 1.0
    %v496 = vadd.f32 %v494, 1.0
    %v497 = vmul.f32 %v481, %v495
    %v498 = vmul.f32 %v482, %v496
    %v499 = vpack.c.bf16 %v498, %v497
    %v500 = vld [vmem:[%s4] sm:$0xf]
    %v501 = vld [vmem:[%s4 + $0x4] sm:$0xf]
    %v502 = vld [vmem:[%s4 + $0x8] sm:$0xf]
    %v503 = vld [vmem:[%s4 + $0xc] sm:$0xf]
    %v504 = vld [vmem:[%s4 + $0x10] sm:$0xf]
    %v505 = vld [vmem:[%s4 + $0x14] sm:$0xf]
    %v506 = vld [vmem:[%s4 + $0x18] sm:$0xf]
    %v507 = vld [vmem:[%s4 + $0x1c] sm:$0xf]
    %v508 = vld [vmem:[%s4 + $0x20] sm:$0xf]
    %v509 = vld [vmem:[%s4 + $0x24] sm:$0xf]
    %v510 = vld [vmem:[%s4 + $0x28] sm:$0xf]
    %v511 = vld [vmem:[%s4 + $0x2c] sm:$0xf]
    %v512 = vld [vmem:[%s4 + $0x30] sm:$0xf]
    %v513 = vld [vmem:[%s4 + $0x34] sm:$0xf]
    %v514 = vld [vmem:[%s4 + $0x38] sm:$0xf]
    %v515 = vld [vmem:[%s4 + $0x3c] sm:$0xf]
    %v516 = vperm.slane %v39, 3
    %v533 = vunpack.c.l.b16 %v500
    %v534 = vunpack.c.l.b16 %v501
    %v535 = vunpack.c.l.b16 %v502
    %v536 = vunpack.c.l.b16 %v503
    %v537 = vunpack.c.l.b16 %v504
    %v538 = vunpack.c.l.b16 %v505
    %v539 = vunpack.c.l.b16 %v506
    %v540 = vunpack.c.l.b16 %v507
    %v541 = vunpack.c.l.b16 %v508
    %v542 = vunpack.c.l.b16 %v509
    %v543 = vunpack.c.l.b16 %v510
    %v544 = vunpack.c.l.b16 %v511
    %v545 = vunpack.c.l.b16 %v512
    %v546 = vunpack.c.l.b16 %v513
    %v547 = vunpack.c.l.b16 %v514
    %v548 = vunpack.c.l.b16 %v515
    %v549 = vpack.c.b16 %v534, %v533
    %v550 = vpack.c.b16 %v536, %v535
    %v551 = vpack.c.b16 %v538, %v537
    %v552 = vpack.c.b16 %v540, %v539
    %v553 = vpack.c.b16 %v542, %v541
    %v554 = vpack.c.b16 %v544, %v543
    %v555 = vpack.c.b16 %v546, %v545
    %v556 = vpack.c.b16 %v548, %v547
    %565 = vmatpush.bf16.msra.mxu0 %v556
    %566 = vmatpush.bf16.msra.mxu0 %v555
    %567 = vmatpush.bf16.msra.mxu0 %v554
    %568 = vmatpush.bf16.msra.mxu0 %v553
    %569 = vmatpush.bf16.msra.mxu0 %v552
    %570 = vmatpush.bf16.msra.mxu0 %v551
    %571 = vmatpush.bf16.msra.mxu0 %v550
    %572 = vmatpush.bf16.msra.mxu0 %v549
    %573 = vmatmul.bf16.gmra.mxu0 %v499
    %v574 = vpop.f32.mrf.mxu0
    %v575 = vadd.f32 %v516, %v574
    %v576 = vpop.f32.mrf.mxu0
    %v577 = vadd.f32 %v516, %v576
    %578 = vdwg.mxu0
    %v579 = vadd.f32 %v444, %v575
    %v580 = vadd.f32 %v445, %v577
    %v581 = vsel %vm58, %v579, 0.0
    %582 = vadd.xlane.f32.xlu0 %v581
    %v583 = vpop.xlane.xlu0 %582
    %v584 = vsel %vm58, %v580, 0.0
    %585 = vadd.xlane.f32.xlu0 %v584
    %v586 = vpop.xlane.xlu0 %585
    %v587 = vmul.f32 %v583, %v401
    %v588 = vmul.f32 %v586, %v401
    %v589 = vsub.f32 %v579, %v587
    %v590 = vsub.f32 %v580, %v588
    %v591 = vmul.f32 %v589, %v589
    %v592 = vmul.f32 %v590, %v590
    %v593 = vsel %vm58, %v591, 0.0
    %594 = vadd.xlane.f32.xlu0 %v593
    %v595 = vpop.xlane.xlu0 %594
    %v596 = vsel %vm58, %v592, 0.0
    %597 = vadd.xlane.f32.xlu0 %v596
    %v598 = vpop.xlane.xlu0 %597
    %v599 = vmul.f32 %v595, %v401
    %v600 = vmul.f32 %v598, %v401
    %v601 = vadd.f32 %v599, 1e-05
    %v602 = vadd.f32 %v600, 1e-05
    %v603 = vrsqrt.pop %v601
    %v604 = vmul.f32 %v603, %v601
    %v605 = vmul.f32 %v604, %v603
    %v606 = vmul.f32 0.5, %v605
    %v607 = vsub.f32 1.5, %v606
    %v608 = vmul.f32 %v603, %v607
    %vm609 = vweird.f32 %v601
    %vm610 = vweird.f32 %v603
    %vm611 = vmor %vm609, %vm610
    %v612 = vsel %vm611, %v603, %v608
    %v613 = vrsqrt.pop %v602
    %v614 = vmul.f32 %v613, %v602
    %v615 = vmul.f32 %v614, %v613
    %v616 = vmul.f32 0.5, %v615
    %v617 = vsub.f32 1.5, %v616
    %v618 = vmul.f32 %v613, %v617
    %vm619 = vweird.f32 %v602
    %vm620 = vweird.f32 %v613
    %vm621 = vmor %vm619, %vm620
    %v622 = vsel %vm621, %v613, %v618
    %v623 = vmul.f32 %v589, %v612
    %v624 = vmul.f32 %v590, %v622
    %v625 = vperm.slane %v39, 6
    %v626 = vmul.f32 %v623, %v625
    %v627 = vmul.f32 %v624, %v625
    %v628 = vperm.slane %v39, 7
    %v629 = vadd.f32 %v626, %v628
    %v630 = vadd.f32 %v627, %v628
    %631 = vst.msk [vmem:[#allocation2] sm:$0xff] %vm58, %v629
    %632 = vst.msk [vmem:[#allocation2 + $0x8] sm:$0xff] %vm58, %v630
    %633 = vst.msk [vmem:[#allocation3] sm:$0xff] %vm58, %v629
    %634 = vst.msk [vmem:[#allocation3 + $0x8] sm:$0xff] %vm58, %v630
    // Predicated region
    $region34: #{gpt_blocks_forward.1} parent=1 // pred_check
      _
    $region35: #{gpt_blocks_forward.1} parent=1 // pred_check_branch
      %636 = sbr.rel (0) target = $region37
    $region36: #{gpt_blocks_forward.1} parent=1 // pred_region
      %638 = vsyncadd [#allocation4], 0
      %s639 = sshll.u32 [#allocation3], 4
      %s640 = int_to_ptr.vmem [resolvable:$true] %s639
      %s641 = sshll.u32 %s7, 4
      %s642 = int_to_ptr.hbm [resolvable:$true] %s641
      %647 = dma.vmem_to_hbm [thread:$0]  %s640, 256, %s642, [#allocation4], 128, 128, 8
    $region37: #{gpt_blocks_forward.1} parent=1 // pred_fallthru
      _
    // Predicated region
    $region38: #{gpt_blocks_forward.1} parent=1 // pred_check
      _
    $region39: #{gpt_blocks_forward.1} parent=1 // pred_check_branch
      %649 = sbr.rel (0) target = $region41
    $region40: #{gpt_blocks_forward.1} parent=1 // pred_region
      %651 = dma.done [#allocation4], 256
    $region41: #{gpt_blocks_forward.1} parent=1 // pred_fallthru
      _
    %652 = vsyncpa [#allocation4], 1

</llo_original>
